<compile_context>
chip_gen: v6e
topology: v6e:2x2x1
jax: 0.10.0
libtpu: 0.0.40
codegen_flags: <defaults>
</compile_context>

<pallas_src>
import functools

import jax
import jax.numpy as jnp
from jax.experimental import pallas as pl
from jax.experimental.pallas import tpu as pltpu


def _gaussian_smearing_kernel(dist_ref, out_ref, *, start, step, coeff,
                              num_gaussians):
    # dist_ref: (TN, 1) f32 tile of flattened distances
    # out_ref:  (TN, G) output tile
    g = jax.lax.broadcasted_iota(jnp.int32, (1, num_gaussians), 1)
    offset = start + step * g.astype(jnp.float32)            # (1, G)
    d = dist_ref[...] - offset                                # (TN,1)-(1,G)->(TN,G)
    out_ref[...] = jnp.exp(coeff * (d * d)).astype(out_ref.dtype)


def gaussian_smearing(dist, *, start=0.0, stop=5.0, num_gaussians=50,
                      tile_n=16384, out_dtype=jnp.float32):
    """Pallas equivalent of GaussianSmearing.forward(dist) -> (N, num_gaussians)."""
    assert num_gaussians >= 2, "need at least 2 gaussians (same as the torch module)"
    # Python-scalar parameter math (jit-safe; mirrors torch linspace spacing).
    step = (float(stop) - float(start)) / (num_gaussians - 1)
    coeff = -0.5 / step ** 2

    dist_col = jnp.reshape(dist, (-1, 1)).astype(jnp.float32)
    n = dist_col.shape[0]

    # --- tile selection ---------------------------------------------------
    # Double-buffered VMEM bytes per tile row:
    #   input block (tile, 1) f32 is lane-padded to 128 lanes -> 512 B/row,
    #   output block (tile, G) in out_dtype -> G*itemsize B/row.
    out_itemsize = jnp.dtype(out_dtype).itemsize
    per_row = 2 * 128 * 4 + 2 * num_gaussians * out_itemsize
    vmem_budget = 30 << 20          # ~2 MiB headroom under the 32 MiB limit

    tile = min(int(tile_n),
               max(32, pl.cdiv(n, 4)),            # >= 4 grid steps when possible
               max(32, vmem_budget // per_row))   # fit the scoped-VMEM budget
    tile = pl.cdiv(tile, 32) * 32                 # f32 (8) & bf16 (16) sublane packing
    grid_n = pl.cdiv(n, tile)

    kernel = functools.partial(
        _gaussian_smearing_kernel,
        start=float(start), step=float(step), coeff=float(coeff),
        num_gaussians=num_gaussians)

    out = pl.pallas_call(
        kernel,
        out_shape=jax.ShapeDtypeStruct((n, num_gaussians), out_dtype),
        grid_spec=pltpu.PrefetchScalarGridSpec(
            num_scalar_prefetch=0,
            grid=(grid_n,),
            # Ragged final blocks (n % tile != 0) are handled by Pallas: the
            # unread tail of the input buffer is stale and the corresponding
            # output rows are masked on store.
            in_specs=[pl.BlockSpec((tile, 1), lambda i: (i, 0))],
            out_specs=pl.BlockSpec((tile, num_gaussians), lambda i: (i, 0)),
        ),
        compiler_params=pltpu.CompilerParams(
            dimension_semantics=("parallel",),
            vmem_limit_bytes=32 * 1024 * 1024),
    )(dist_col)
    return out


def _reference(dist, *, start=0.0, stop=5.0, num_gaussians=50):
    offset = jnp.linspace(start, stop, num_gaussians, dtype=jnp.float32)
    step = (float(stop) - float(start)) / (num_gaussians - 1)
    coeff = -0.5 / step ** 2
    d = jnp.reshape(dist, (-1, 1)).astype(jnp.float32) - offset[None, :]
    return jnp.exp(coeff * d * d)


if __name__ == "__main__":
    key = jax.random.PRNGKey(0)
    k1, k2 = jax.random.split(key)

    # 200 pairwise distances in [0, 5) — matches the module's intended use.
    dist1 = jax.random.uniform(k1, (200,), dtype=jnp.float32, minval=0.0, maxval=5.0)
    out1 = jax.block_until_ready(gaussian_smearing(dist1))
    ref1 = _reference(dist1)
    assert out1.shape == (200, 50), out1.shape
    assert jnp.allclose(out1, ref1, atol=1e-4, rtol=1e-4), "mismatch vs reference (200,)"

    # Multi-dim, non-divisible size exercises the flatten + ragged-tail masking.
    dist2 = jax.random.uniform(k2, (3, 33), dtype=jnp.float32, minval=0.0, maxval=5.0)
    out2 = jax.block_until_ready(gaussian_smearing(dist2))
    ref2 = _reference(dist2)
    assert out2.shape == (99, 50), out2.shape
    assert jnp.allclose(out2, ref2, atol=1e-4, rtol=1e-4), "mismatch vs reference (3,33)"

    # bf16 store opt-in (halves HBM write bytes on the write-bound v5e/v6e);
    # looser tolerance — f32 stays the torch-parity default.
    out3 = jax.block_until_ready(gaussian_smearing(dist2, out_dtype=jnp.bfloat16))
    assert out3.shape == (99, 50), out3.shape
    assert jnp.allclose(out3.astype(jnp.float32), ref2, atol=1e-2, rtol=1e-2), \
        "mismatch vs reference (bf16 stores)"

    print("KERNEL_OK")
</pallas_src>

<mosaic_0001>
module attributes {stable_mosaic.version = 11 : i64} {
  func.func @_gaussian_smearing_kernel(%arg0: i32, %arg1: memref<64x1xf32, #tpu.memory_space<vmem>>, %arg2: memref<64x50xf32, #tpu.memory_space<vmem>>) attributes {dimension_semantics = [#tpu.dimension_semantics<parallel>], iteration_bounds = array<i64: 4>, scalar_prefetch = 0 : i64, scratch_operands = 0 : i64, tpu.core_type = #tpu.core_type<tc>, window_params = [{transform_indices = @transform_0, window_bounds = array<i64: 64, 1>}, {transform_indices = @transform_1, window_bounds = array<i64: 64, 50>}]} {
    %0 = tpu.iota {dimensions = array<i32: 1>} : vector<1x50xi32>
    %1 = arith.sitofp %0 : vector<1x50xi32> to vector<1x50xf32>
    %cst = arith.constant 0.10204082 : f32
    %2 = vector.broadcast %cst : f32 to vector<1x50xf32>
    %3 = arith.mulf %2, %1 : vector<1x50xf32>
    %cst_0 = arith.constant 0.000000e+00 : f32
    %4 = vector.broadcast %cst_0 : f32 to vector<1x50xf32>
    %5 = arith.addf %4, %3 : vector<1x50xf32>
    %c0 = arith.constant 0 : index
    %c0_1 = arith.constant 0 : index
    %6 = vector.load %arg1[%c0, %c0_1] : memref<64x1xf32, #tpu.memory_space<vmem>>, vector<64x1xf32>
    %7 = vector.broadcast %6 : vector<64x1xf32> to vector<64x50xf32>
    %8 = vector.broadcast %5 : vector<1x50xf32> to vector<64x50xf32>
    %9 = arith.subf %7, %8 : vector<64x50xf32>
    %10 = arith.mulf %9, %9 : vector<64x50xf32>
    %cst_2 = arith.constant -4.802000e+01 : f32
    %11 = vector.broadcast %cst_2 : f32 to vector<64x50xf32>
    %12 = arith.mulf %11, %10 : vector<64x50xf32>
    %13 = math.exp %12 : vector<64x50xf32>
    %c0_3 = arith.constant 0 : index
    %c0_4 = arith.constant 0 : index
    %14 = vector.load %arg2[%c0_3, %c0_4] : memref<64x50xf32, #tpu.memory_space<vmem>>, vector<64x50xf32>
    tpu.vector_store %arg2[%c0_3, %c0_4], %13 {strides = array<i32>} : memref<64x50xf32, #tpu.memory_space<vmem>>, vector<64x50xf32>,
    return
  }
  func.func @transform_0(%arg0: i32) -> (i32, i32) {
    %c0_i32 = arith.constant 0 : i32
    %c0_i32_0 = arith.constant 0 : i32
    return %arg0, %c0_i32 : i32, i32
  }
  func.func @transform_1(%arg0: i32) -> (i32, i32) {
    %c0_i32 = arith.constant 0 : i32
    %c0_i32_0 = arith.constant 0 : i32
    return %arg0, %c0_i32 : i32, i32
  }
}

</mosaic_0001>

<llo_original>
// kernel: tpu_custom_call.1
$region0: #{tpu_custom_call.1}
  #allocation0 [shape = 'u32[]', space=smem, size = 0x4, offset = 0x4, fixed_abs, tag = 'smem constant byte address 0x4 - core index']
  #allocation1 [shape = 'u32[144,128]{1,0:T(1,128)}', space=vmem, size = 0x12000, scoped, tag = 'internal scratch']
  %s0 = inlined_call_operand.vmem [shape: f32[200,1], index: 0, kind: input, shape index: {}]
  %s1 = inlined_call_operand.vmem [shape: f32[200,50], index: 1, kind: output, shape index: {}]
  %s2 = sld [smem:[#allocation0]]
  $region85: #{tpu_custom_call.1} parent=0
    _
  %s4 = ssub.s32 1, %s2
  %s5 = scalar_select 0, %s4, %s2
  $region1: #{tpu_custom_call.1} parent=0
    #allocation2 [shape = 'u8[65536]{0}', space=vmem, size = 0x10000, scoped, tag = 'output window, operand 0']
    loop: start=0, step=1, limit=6
    $region2: #{tpu_custom_call.1} parent=1 // loop_pre_header
      _
    $region3: #{tpu_custom_call.1} parent=1 // loop_header
      %s7 = sphi 0, %s11
      %p8 = scmp.ge.s32.totalorder %s7, 6
      %s17 = sphi 0, %s19
      %s20 = sphi 0, %s17
      %s21 = sphi 0, %s20
      %s37 = sphi 0, %s21
      %s43 = sphi 0, %s45
      %s46 = sphi 0, %s43
      %s47 = sphi 0, %s46
      %s63 = sphi 0, %s47
    $region4: #{tpu_custom_call.1} parent=1 // loop_header_branch
      %10 = sbr.rel (%p8) target = $region8
    $region5: #{tpu_custom_call.1} parent=1 // loop_body
      %s12 = ssub.s32 %s7, 1
      %s13 = ssub.s32 %s7, 2
      %s14 = sadd.s32 %s7, 1
      %s15 = ssub.s32 %s7, %s14
      %p16 = scmp.eq.s32.totalorder %s15, 0
      %s18 = sadd.s32 %s17, 1
      %s19 = scalar_select %p16, %s17, %s18
      %p22 = pneg %p16
      %p23 = scmp.eq.s32.totalorder %s7, 3
      %p24 = por %p22, %p23
      %p25 = scmp.ne.s32.totalorder %s17, %s20
      %p26 = scmp.eq.s32.totalorder %s7, 0
      %p27 = por %p25, %p26
      %p28 = scmp.ne.s32.totalorder %s17, %s20
      %p29 = scmp.eq.s32.totalorder %s12, 3
      %p30 = por %p28, %p29
      %p31 = scmp.ne.s32.totalorder %s20, %s21
      %p32 = scmp.eq.s32.totalorder %s12, 0
      %p33 = por %p31, %p32
      %p34 = scmp.ne.s32.totalorder %s20, %s21
      %p35 = scmp.eq.s32.totalorder %s13, 3
      %p36 = por %p34, %p35
      %p38 = scmp.ne.s32.totalorder %s21, %s37
      %p39 = scmp.eq.s32.totalorder %s13, 0
      %p40 = por %p38, %p39
      %s41 = ssub.s32 %s7, %s14
      %p42 = scmp.eq.s32.totalorder %s41, 0
      %s44 = sadd.s32 %s43, 1
      %s45 = scalar_select %p42, %s43, %s44
      %p48 = pneg %p42
      %p49 = scmp.eq.s32.totalorder %s7, 3
      %p50 = por %p48, %p49
      %p51 = scmp.ne.s32.totalorder %s43, %s46
      %p52 = scmp.eq.s32.totalorder %s7, 0
      %p53 = por %p51, %p52
      %p54 = scmp.ne.s32.totalorder %s43, %s46
      %p55 = scmp.eq.s32.totalorder %s12, 3
      %p56 = por %p54, %p55
      %p57 = scmp.ne.s32.totalorder %s46, %s47
      %p58 = scmp.eq.s32.totalorder %s12, 0
      %p59 = por %p57, %p58
      %p60 = scmp.ne.s32.totalorder %s46, %s47
      %p61 = scmp.eq.s32.totalorder %s13, 3
      %p62 = por %p60, %p61
      %p64 = scmp.ne.s32.totalorder %s47, %s63
      %p65 = scmp.eq.s32.totalorder %s13, 0
      %p66 = por %p64, %p65
      %p67 = scmp.le.s32.totalorder 1, %s7
      %p68 = scmp.lt.s32.totalorder %s7, 5
      %p69 = pnand %p67, %p68
      %p70 = pneg %p69
      // Predicated region
      $region9: #{tpu_custom_call.1} parent=5 // pred_check
        _
      $region10: #{tpu_custom_call.1} parent=5 // pred_check_branch
        %72 = sbr.rel (%p69) target = $region12
      $region11: #{tpu_custom_call.1} parent=5 // pred_region
        %s73 = ssub.s32 %s7, 1
      $region12: #{tpu_custom_call.1} parent=5 // pred_fallthru
        _
      %p74 = scmp.lt.s32.totalorder %s7, 4
      // Predicated region
      $region13: #{tpu_custom_call.1} parent=5 // pred_check
        %p75 = pneg %p74
      $region14: #{tpu_custom_call.1} parent=5 // pred_check_branch
        %77 = sbr.rel (%p75) target = $region16
      $region15: #{tpu_custom_call.1} parent=5 // pred_region
        // Predicated region
        $region17: #{tpu_custom_call.1} parent=15 // pred_check
          %p78 = pneg %p27
        $region18: #{tpu_custom_call.1} parent=15 // pred_check_branch
          %80 = sbr.rel (%p78) target = $region20
        $region19: #{tpu_custom_call.1} parent=15 // pred_region
          %s81 = smul.u32 8, %s7
          %s82 = ssub.s32 25, %s81
          %p83 = scmp.lt.s32.totalorder %s82, 8
          %s84 = scalar_select %p83, %s82, 8
          %s85 = smul.u32 128, %s84
          %p86 = scmp.lt.s32.totalorder %s81, 24
          %s87 = scalar_select %p86, %s81, 24
          %s88 = smul.addr %s87, 8
          %s89 = scalar_lea.vmem %s0, %s88
          %s90 = smul.u32 8, %s7
          %s91 = ssub.s32 25, %s90
          %p92 = scmp.lt.s32.totalorder %s91, 8
          %s93 = scalar_select %p92, %s91, 8
          %s94 = smul.u32 128, %s93
        $region20: #{tpu_custom_call.1} parent=15 // pred_fallthru
          _
      $region16: #{tpu_custom_call.1} parent=5 // pred_fallthru
        _
      %p95 = scmp.le.s32.totalorder 1, %s7
      %p96 = scmp.lt.s32.totalorder %s7, 5
      %p97 = pnand %p95, %p96
      %p98 = pneg %p97
      // Predicated region
      $region21: #{tpu_custom_call.1} parent=5 // pred_check
        _
      $region22: #{tpu_custom_call.1} parent=5 // pred_check_branch
        %100 = sbr.rel (%p97) target = $region24
      $region23: #{tpu_custom_call.1} parent=5 // pred_region
        %s101 = ssub.s32 %s7, 1
        %s102 = smul.u32 8, %s12
        %s103 = ssub.s32 25, %s102
        %p104 = scmp.lt.s32.totalorder %s103, 8
        %s105 = scalar_select %p104, %s103, 8
        %s106 = smul.u32 128, %s105
        %p107 = scmp.lt.s32.totalorder %s102, 24
        %s108 = scalar_select %p107, %s102, 24
        %s109 = smul.addr %s108, 8
        %s110 = scalar_lea.vmem %s0, %s109
        %p111 = pneg %p33
        %p112 = pneg %p30
        %p113 = pneg %p59
        %p114 = pneg %p56
        %s115 = sand.u32 %s46, 1
        %s116 = sand.u32 %s46, 1
        %s117 = smul.addr %s116, 64
        %s118 = scalar_lea.vmem [#allocation2], %s117
        %s119 = smul.u32 8, %s12
        %s120 = ssub.s32 25, %s119
        %p121 = scmp.lt.s32.totalorder %s120, 8
        %s122 = scalar_select %p121, %s120, 8
        %s123 = smul.u32 128, %s122
        %p124 = scmp.lt.s32.totalorder %s119, 24
        %s125 = scalar_select %p124, %s119, 24
        %s126 = smul.addr %s125, 8
        %s127 = scalar_lea.vmem %s0, %s126
        %s128 = smul.u32 8, %s12
        %s129 = ssub.s32 25, %s128
        %p130 = scmp.lt.s32.totalorder %s129, 8
        %s131 = scalar_select %p130, %s129, 8
        %s132 = smul.u32 128, %s131
        %s133 = smul.u32 8, %s12
        %s134 = ssub.s32 25, %s133
        %p135 = scmp.lt.s32.totalorder %s134, 8
        %s136 = scalar_select %p135, %s134, 8
        %s137 = smul.u32 128, %s136
        %v138 = vlaneseq
        %v139 = vand.u32 %v138, 127
        %v140 = vcvt.s32.f32 %v139
        %v141 = vmul.f32 %v140, 0.10204082
        %v142 = vadd.f32 %v141, 0.0
        %v143 = vld [vmem:[%s127] sm:$0xff]
        %v144 = vld [vmem:[%s127 + $0x8] sm:$0xff]
        %v145 = vld [vmem:[%s127 + $0x10] sm:$0xff]
        %v146 = vld [vmem:[%s127 + $0x18] sm:$0xff]
        %v147 = vld [vmem:[%s127 + $0x20] sm:$0xff]
        %v148 = vld [vmem:[%s127 + $0x28] sm:$0xff]
        %v149 = vld [vmem:[%s127 + $0x30] sm:$0xff]
        %v150 = vld [vmem:[%s127 + $0x38] sm:$0xff]
        %152 = vset.pattern.permute.xlu0 0
        %153 = vperm.xlu0 %152, %v143
        %v154 = vpop.permute.xlu0 %153
        %157 = vset.pattern.permute.xlu0 0
        %158 = vperm.xlu0 %157, %v144
        %v159 = vpop.permute.xlu0 %158
        %162 = vset.pattern.permute.xlu0 0
        %163 = vperm.xlu0 %162, %v145
        %v164 = vpop.permute.xlu0 %163
        %167 = vset.pattern.permute.xlu0 0
        %168 = vperm.xlu0 %167, %v146
        %v169 = vpop.permute.xlu0 %168
        %172 = vset.pattern.permute.xlu0 0
        %173 = vperm.xlu0 %172, %v147
        %v174 = vpop.permute.xlu0 %173
        %177 = vset.pattern.permute.xlu0 0
        %178 = vperm.xlu0 %177, %v148
        %v179 = vpop.permute.xlu0 %178
        %182 = vset.pattern.permute.xlu0 0
        %183 = vperm.xlu0 %182, %v149
        %v184 = vpop.permute.xlu0 %183
        %187 = vset.pattern.permute.xlu0 0
        %188 = vperm.xlu0 %187, %v150
        %v189 = vpop.permute.xlu0 %188
        %v191 = vsub.f32 %v154, %v142
        %v192 = vsub.f32 %v159, %v142
        %v193 = vsub.f32 %v164, %v142
        %v194 = vsub.f32 %v169, %v142
        %v195 = vsub.f32 %v174, %v142
        %v196 = vsub.f32 %v179, %v142
        %v197 = vsub.f32 %v184, %v142
        %v198 = vsub.f32 %v189, %v142
        %v199 = vmul.f32 %v191, %v191
        %v200 = vmul.f32 %v192, %v192
        %v201 = vmul.f32 %v193, %v193
        %v202 = vmul.f32 %v194, %v194
        %v203 = vmul.f32 %v195, %v195
        %v204 = vmul.f32 %v196, %v196
        %v205 = vmul.f32 %v197, %v197
        %v206 = vmul.f32 %v198, %v198
        %v207 = vmul.f32 %v199, -48.02
        %v208 = vmul.f32 %v200, -48.02
        %v209 = vmul.f32 %v201, -48.02
        %v210 = vmul.f32 %v202, -48.02
        %v211 = vmul.f32 %v203, -48.02
        %v212 = vmul.f32 %v204, -48.02
        %v213 = vmul.f32 %v205, -48.02
        %v214 = vmul.f32 %v206, -48.02
        %v215 = vmul.f32 %v207, 1.442695
        %v216 = vpow.pop %v215
        %v217 = vmul.f32 %v208, 1.442695
        %v218 = vpow.pop %v217
        %v219 = vmul.f32 %v209, 1.442695
        %v220 = vpow.pop %v219
        %v221 = vmul.f32 %v210, 1.442695
        %v222 = vpow.pop %v221
        %v223 = vmul.f32 %v211, 1.442695
        %v224 = vpow.pop %v223
        %v225 = vmul.f32 %v212, 1.442695
        %v226 = vpow.pop %v225
        %v227 = vmul.f32 %v213, 1.442695
        %v228 = vpow.pop %v227
        %v229 = vmul.f32 %v214, 1.442695
        %v230 = vpow.pop %v229
        %vm231 = vcmask 408576
        %232 = vst.msk [vmem:[%s118] sm:$0xff] %vm231, %v216
        %233 = vst.msk [vmem:[%s118 + $0x8] sm:$0xff] %vm231, %v218
        %234 = vst.msk [vmem:[%s118 + $0x10] sm:$0xff] %vm231, %v220
        %235 = vst.msk [vmem:[%s118 + $0x18] sm:$0xff] %vm231, %v222
        %236 = vst.msk [vmem:[%s118 + $0x20] sm:$0xff] %vm231, %v224
        %237 = vst.msk [vmem:[%s118 + $0x28] sm:$0xff] %vm231, %v226
        %238 = vst.msk [vmem:[%s118 + $0x30] sm:$0xff] %vm231, %v228
        %239 = vst.msk [vmem:[%s118 + $0x38] sm:$0xff] %vm231, %v230
        %s240 = sand.u32 %s46, 1
        %s241 = sand.u32 %s46, 1
        %s242 = smul.addr %s241, 64
        %s243 = scalar_lea.vmem [#allocation2], %s242
        // Predicated region
        $region25: #{tpu_custom_call.1} parent=23 // pred_check
          %p244 = pneg %p56
        $region26: #{tpu_custom_call.1} parent=23 // pred_check_branch
          %246 = sbr.rel (%p244) target = $region28
        $region27: #{tpu_custom_call.1} parent=23 // pred_region
          %s247 = smul.u32 8, %s12
          %s248 = ssub.s32 25, %s247
          %p249 = scmp.lt.s32.totalorder %s248, 8
          %s250 = scalar_select %p249, %s248, 8
          %s251 = smul.u32 128, %s250
          %p252 = scmp.ne.s32.totalorder 0, %s251
          %s253 = smul.addr %s247, 8
          %s254 = scalar_lea.vmem %s1, %s253
          // Predicated region
          $region29: #{tpu_custom_call.1} parent=27 // pred_check
            %p255 = pneg %p252
          $region30: #{tpu_custom_call.1} parent=27 // pred_check_branch
            %257 = sbr.rel (%p255) target = $region32
          $region31: #{tpu_custom_call.1} parent=27 // pred_region
            // Predicated region
            $region33: #{tpu_custom_call.1} parent=31 // pred_check
              _
            $region34: #{tpu_custom_call.1} parent=31 // pred_check_branch
              %259 = sbr.rel (0) target = $region36
            $region35: #{tpu_custom_call.1} parent=31 // pred_region
              // Predicated region
              $region55: #{tpu_custom_call.1} parent=35 // pred_check
                _
              $region56: #{tpu_custom_call.1} parent=35 // pred_check_branch
                %323 = sbr.rel (0) target = $region58
              $region57: #{tpu_custom_call.1} parent=35 // pred_region
                %s324 = sshrl.u32 %s250, 3
                // While loop
                $region59: #{tpu_custom_call.1} parent=57 // loop_pre_header
                  _
                $region60: #{tpu_custom_call.1} parent=57 // loop_header
                  %s326 = sphi 0, %s328
                  %p327 = scmp.ge.s32.totalorder %s326, %s324
                  %s331 = sphi 0, %s352
                  %s332 = sphi %s243, %s355
                  %s333 = sphi %s254, %s356
                $region61: #{tpu_custom_call.1} parent=57 // loop_header_branch
                  %330 = sbr.rel (%p327) target = $region65
                $region62: #{tpu_custom_call.1} parent=57 // loop_body
                  %v334 = vld [vmem:[%s332] sm:$0xff]
                  %335 = vst [vmem:[%s333] sm:$0xff] %v334
                  %v336 = vld [vmem:[%s332 + $0x8] sm:$0xff]
                  %337 = vst [vmem:[%s333 + $0x8] sm:$0xff] %v336
                  %v338 = vld [vmem:[%s332 + $0x10] sm:$0xff]
                  %339 = vst [vmem:[%s333 + $0x10] sm:$0xff] %v338
                  %v340 = vld [vmem:[%s332 + $0x18] sm:$0xff]
                  %341 = vst [vmem:[%s333 + $0x18] sm:$0xff] %v340
                  %v342 = vld [vmem:[%s332 + $0x20] sm:$0xff]
                  %343 = vst [vmem:[%s333 + $0x20] sm:$0xff] %v342
                  %v344 = vld [vmem:[%s332 + $0x28] sm:$0xff]
                  %345 = vst [vmem:[%s333 + $0x28] sm:$0xff] %v344
                  %v346 = vld [vmem:[%s332 + $0x30] sm:$0xff]
                  %347 = vst [vmem:[%s333 + $0x30] sm:$0xff] %v346
                  %v348 = vld [vmem:[%s332 + $0x38] sm:$0xff]
                  %349 = vst [vmem:[%s333 + $0x38] sm:$0xff] %v348
                  %s350 = sadd.s32 1, %s331
                  %p351 = scmp.ge.s32.totalorder %s350, %s324
                  %s352 = scalar_select %p351, 0, %s350
                  %s353 = smul.u32 %s352, 64
                  %s354 = smul.u32 %s352, 64
                  %s355 = scalar_lea.vmem %s243, %s353 [#allocation2]
                  %s356 = scalar_lea.vmem %s254, %s354
                $region63: #{tpu_custom_call.1} parent=57 // loop_footer
                  %s328 = sadd.s32 %s326, 1
                $region64: #{tpu_custom_call.1} parent=57 // loop_footer_branch
                  %325 = sbr.rel target = $region60
                $region65: #{tpu_custom_call.1} parent=57 // loop_exit
                  _
                %s357 = sshrl.u32 %s250, 3
                %s358 = sand.u32 %s250, 7
                %s359 = smul.u32 %s357, 8
                %s360 = smul.u32 8, %s359
                %s361 = scalar_lea.vmem %s243, %s360 [#allocation2]
                %s362 = smul.u32 8, %s359
                %s363 = scalar_lea.vmem %s254, %s362
                // While loop
                $region66: #{tpu_custom_call.1} parent=57 // loop_pre_header
                  _
                $region67: #{tpu_custom_call.1} parent=57 // loop_header
                  %s365 = sphi 0, %s367
                  %p366 = scmp.ge.s32.totalorder %s365, %s358
                  %s370 = sphi 0, %s377
                  %s371 = sphi %s361, %s380
                  %s372 = sphi %s363, %s381
                $region68: #{tpu_custom_call.1} parent=57 // loop_header_branch
                  %369 = sbr.rel (%p366) target = $region72
                $region69: #{tpu_custom_call.1} parent=57 // loop_body
                  %v373 = vld [vmem:[%s371] sm:$0xff]
                  %374 = vst [vmem:[%s372] sm:$0xff] %v373
                  %s375 = sadd.s32 1, %s370
                  %p376 = scmp.ge.s32.totalorder %s375, %s358
                  %s377 = scalar_select %p376, 0, %s375
                  %s378 = smul.u32 %s377, 8
                  %s379 = smul.u32 %s377, 8
                  %s380 = scalar_lea.vmem %s361, %s378 [#allocation2]
                  %s381 = scalar_lea.vmem %s363, %s379
                $region70: #{tpu_custom_call.1} parent=57 // loop_footer
                  %s367 = sadd.s32 %s365, 1
                $region71: #{tpu_custom_call.1} parent=57 // loop_footer_branch
                  %364 = sbr.rel target = $region67
                $region72: #{tpu_custom_call.1} parent=57 // loop_exit
                  _
              $region58: #{tpu_custom_call.1} parent=35 // pred_fallthru
                _
              // Predicated region
              $region73: #{tpu_custom_call.1} parent=35 // pred_check
                _
              $region74: #{tpu_custom_call.1} parent=35 // pred_check_branch
                %383 = sbr.rel target = $region76
              $region75: #{tpu_custom_call.1} parent=35 // pred_region
                _
              $region76: #{tpu_custom_call.1} parent=35 // pred_fallthru
                _
            $region36: #{tpu_custom_call.1} parent=31 // pred_fallthru
              _
            // Predicated region
            $region37: #{tpu_custom_call.1} parent=31 // pred_check
              _
            $region38: #{tpu_custom_call.1} parent=31 // pred_check_branch
              %261 = sbr.rel target = $region40
            $region39: #{tpu_custom_call.1} parent=31 // pred_region
              %s263 = ssub.s32 256, 1
              %s264 = sshrl.u32 %s250, 3
              // While loop
              $region41: #{tpu_custom_call.1} parent=39 // loop_pre_header
                _
              $region42: #{tpu_custom_call.1} parent=39 // loop_header
                %s266 = sphi 0, %s268
                %p267 = scmp.ge.s32.totalorder %s266, %s264
                %s271 = sphi 0, %s292
                %s272 = sphi %s243, %s295
                %s273 = sphi %s254, %s296
              $region43: #{tpu_custom_call.1} parent=39 // loop_header_branch
                %270 = sbr.rel (%p267) target = $region47
              $region44: #{tpu_custom_call.1} parent=39 // loop_body
                %v274 = vld [vmem:[%s272] sm:%s263]
                %275 = vst [vmem:[%s273] sm:%s263] %v274
                %v276 = vld [vmem:[%s272 + $0x8] sm:%s263]
                %277 = vst [vmem:[%s273 + $0x8] sm:%s263] %v276
                %v278 = vld [vmem:[%s272 + $0x10] sm:%s263]
                %279 = vst [vmem:[%s273 + $0x10] sm:%s263] %v278
                %v280 = vld [vmem:[%s272 + $0x18] sm:%s263]
                %281 = vst [vmem:[%s273 + $0x18] sm:%s263] %v280
                %v282 = vld [vmem:[%s272 + $0x20] sm:%s263]
                %283 = vst [vmem:[%s273 + $0x20] sm:%s263] %v282
                %v284 = vld [vmem:[%s272 + $0x28] sm:%s263]
                %285 = vst [vmem:[%s273 + $0x28] sm:%s263] %v284
                %v286 = vld [vmem:[%s272 + $0x30] sm:%s263]
                %287 = vst [vmem:[%s273 + $0x30] sm:%s263] %v286
                %v288 = vld [vmem:[%s272 + $0x38] sm:%s263]
                %289 = vst [vmem:[%s273 + $0x38] sm:%s263] %v288
                %s290 = sadd.s32 1, %s271
                %p291 = scmp.ge.s32.totalorder %s290, %s264
                %s292 = scalar_select %p291, 0, %s290
                %s293 = smul.u32 %s292, 64
                %s294 = smul.u32 %s292, 64
                %s295 = scalar_lea.vmem %s243, %s293 [#allocation2]
                %s296 = scalar_lea.vmem %s254, %s294
              $region45: #{tpu_custom_call.1} parent=39 // loop_footer
                %s268 = sadd.s32 %s266, 1
              $region46: #{tpu_custom_call.1} parent=39 // loop_footer_branch
                %265 = sbr.rel target = $region42
              $region47: #{tpu_custom_call.1} parent=39 // loop_exit
                _
              %s297 = sshrl.u32 %s250, 3
              %s298 = sand.u32 %s250, 7
              %s299 = smul.u32 %s297, 8
              %s300 = smul.u32 8, %s299
              %s301 = scalar_lea.vmem %s243, %s300 [#allocation2]
              %s302 = smul.u32 8, %s299
              %s303 = scalar_lea.vmem %s254, %s302
              // While loop
              $region48: #{tpu_custom_call.1} parent=39 // loop_pre_header
                _
              $region49: #{tpu_custom_call.1} parent=39 // loop_header
                %s305 = sphi 0, %s307
                %p306 = scmp.ge.s32.totalorder %s305, %s298
                %s310 = sphi 0, %s317
                %s311 = sphi %s301, %s320
                %s312 = sphi %s303, %s321
              $region50: #{tpu_custom_call.1} parent=39 // loop_header_branch
                %309 = sbr.rel (%p306) target = $region54
              $region51: #{tpu_custom_call.1} parent=39 // loop_body
                %v313 = vld [vmem:[%s311] sm:%s263]
                %314 = vst [vmem:[%s312] sm:%s263] %v313
                %s315 = sadd.s32 1, %s310
                %p316 = scmp.ge.s32.totalorder %s315, %s298
                %s317 = scalar_select %p316, 0, %s315
                %s318 = smul.u32 %s317, 8
                %s319 = smul.u32 %s317, 8
                %s320 = scalar_lea.vmem %s301, %s318 [#allocation2]
                %s321 = scalar_lea.vmem %s303, %s319
              $region52: #{tpu_custom_call.1} parent=39 // loop_footer
                %s307 = sadd.s32 %s305, 1
              $region53: #{tpu_custom_call.1} parent=39 // loop_footer_branch
                %304 = sbr.rel target = $region49
              $region54: #{tpu_custom_call.1} parent=39 // loop_exit
                _
            $region40: #{tpu_custom_call.1} parent=31 // pred_fallthru
              _
          $region32: #{tpu_custom_call.1} parent=27 // pred_fallthru
            _
          %384 = vnop
        $region28: #{tpu_custom_call.1} parent=23 // pred_fallthru
          _
      $region24: #{tpu_custom_call.1} parent=5 // pred_fallthru
        _
      %p385 = scmp.le.s32.totalorder 2, %s7
      // Predicated region
      $region77: #{tpu_custom_call.1} parent=5 // pred_check
        %p386 = pneg %p385
      $region78: #{tpu_custom_call.1} parent=5 // pred_check_branch
        %388 = sbr.rel (%p386) target = $region80
      $region79: #{tpu_custom_call.1} parent=5 // pred_region
        %s389 = ssub.s32 %s7, 2
        // Predicated region
        $region81: #{tpu_custom_call.1} parent=79 // pred_check
          %p390 = pneg %p62
        $region82: #{tpu_custom_call.1} parent=79 // pred_check_branch
          %392 = sbr.rel (%p390) target = $region84
        $region83: #{tpu_custom_call.1} parent=79 // pred_region
          %s393 = sand.u32 %s47, 1
          %s394 = sand.u32 %s47, 1
          %s395 = smul.addr %s394, 64
          %s396 = scalar_lea.vmem [#allocation2], %s395
        $region84: #{tpu_custom_call.1} parent=79 // pred_fallthru
          _
      $region80: #{tpu_custom_call.1} parent=5 // pred_fallthru
        _
    $region6: #{tpu_custom_call.1} parent=1 // loop_footer
      %s11 = sadd.s32 1, %s7
    $region7: #{tpu_custom_call.1} parent=1 // loop_footer_branch
      %6 = sbr.rel target = $region3
    $region8: #{tpu_custom_call.1} parent=1 // loop_exit
      _

</llo_original>
